<compile_context>
chip_gen: v7x
topology: tpu7x:2x2x1
jax: 0.10.0
libtpu: 0.0.40
codegen_flags: <defaults>
</compile_context>

<pallas_src>
import functools

import jax
import jax.numpy as jnp
import numpy as np
from jax.experimental import pallas as pl
from jax.experimental.pallas import tpu as pltpu


# ----------------------------------------------------------------------------
# Pallas kernel
# ----------------------------------------------------------------------------
def contrast_partial_kernel(q_ref, tmap_ref, mpos_ref, mneg_ref, out_ref, *, inv_tao):
    """Partial masked exp-sum reduction for one (batch, seq-tile) grid point.

    q_ref   : (1, 1, H)      query for this batch element
    tmap_ref: (1, TS, S, H)  tile of the 2-D temporal map
    mpos_ref: (1, TS, S)     positive mask (float32 0/1)
    mneg_ref: (1, TS, S)     negative mask (float32 0/1)
    out_ref : (1, 1, 128)    per-batch accumulator, resident across the tile axis
              lane 0: sum_pos exp(sim/tao)   lane 1: sum_neg exp(sim/tao)
              lane 2: n_pos                  lane 3: n_neg
    """
    t = pl.program_id(1)

    @pl.when(t == 0)
    def _():
        out_ref[...] = jnp.zeros_like(out_ref)

    # Normalized query (matches sim(): x / (||x|| + 1e-8)).
    q = q_ref[0]                                                    # (1, H)
    q_norm = jnp.sqrt(jnp.sum(q * q, axis=-1, keepdims=True))       # (1, 1)
    qn = q / (q_norm + 1e-8)                                        # (1, H)

    x = tmap_ref[0]                                                 # (TS, S, H)

    # Row dot products and row norms (two lane reductions over H).
    dot = jnp.sum(x * qn, axis=-1)                                  # (TS, S)
    rsq = jnp.sum(x * x, axis=-1)                                   # (TS, S)
    rnorm = jnp.sqrt(rsq)

    # cos_sim with the module's eps handling: rows are divided by ||r|| (no eps)
    # and then re-normalized inside sim() by (1 + 1e-8).  Guard ||r|| == 0 only
    # for cells that the masks never select.
    inv_r = 1.0 / (jnp.maximum(rnorm, 1e-30) * (1.0 + 1e-8))
    s = dot * inv_r                                                 # (TS, S)
    e = jnp.exp(s * inv_tao)                                        # (TS, S)

    mp = mpos_ref[0]                                                # (TS, S)
    mn = mneg_ref[0]

    pos_s = jnp.sum(e * mp)
    neg_s = jnp.sum(e * mn)
    pos_c = jnp.sum(mp)
    neg_c = jnp.sum(mn)

    lane = jax.lax.broadcasted_iota(jnp.int32, (1, 1, 128), 2)
    vec = jnp.zeros((1, 1, 128), jnp.float32)
    vec = jnp.where(lane == 0, pos_s, vec)
    vec = jnp.where(lane == 1, neg_s, vec)
    vec = jnp.where(lane == 2, pos_c, vec)
    vec = jnp.where(lane == 3, neg_c, vec)

    out_ref[...] = out_ref[...] + vec


# ----------------------------------------------------------------------------
# Wrapper
# ----------------------------------------------------------------------------
def contrast_loss(pos_query, tmap, mask2d_pos, mask2d_neg, *, tao=1.0, seq_tile=8):
    """Equivalent of ContrastLoss.forward (margin / neg_ratio are unused there too).

    pos_query : (B, H) float
    tmap      : (B, S, S, H) float
    mask2d_pos: (B, S, S) bool (or 0/1)
    mask2d_neg: (B, S, S) bool (or 0/1)
    Returns a scalar loss.
    """
    B, S, S2, H = tmap.shape
    assert S2 == S

    # Tile the first seq axis; keep the second seq axis and H full (lane-dense).
    ts = seq_tile
    if S % ts != 0 or ts % 8 != 0:
        ts = S                       # fall back to one tile (block == full dim)
    n_t = S // ts

    q3 = pos_query.astype(jnp.float32).reshape(B, 1, H)
    tm = tmap.astype(jnp.float32)
    mp = mask2d_pos.astype(jnp.float32)
    mn = mask2d_neg.astype(jnp.float32)

    kernel = functools.partial(contrast_partial_kernel, inv_tao=float(1.0 / tao))

    partials = pl.pallas_call(
        kernel,
        out_shape=jax.ShapeDtypeStruct((B, 1, 128), jnp.float32),
        grid_spec=pltpu.PrefetchScalarGridSpec(
            num_scalar_prefetch=0,
            grid=(B, n_t),
            in_specs=[
                pl.BlockSpec((1, 1, H), lambda b, t: (b, 0, 0)),      # pos_query
                pl.BlockSpec((1, ts, S, H), lambda b, t: (b, t, 0, 0)),  # tmap
                pl.BlockSpec((1, ts, S), lambda b, t: (b, t, 0)),     # mask pos
                pl.BlockSpec((1, ts, S), lambda b, t: (b, t, 0)),     # mask neg
            ],
            out_specs=pl.BlockSpec((1, 1, 128), lambda b, t: (b, 0, 0)),
        ),
        compiler_params=pltpu.CompilerParams(
            dimension_semantics=("parallel", "arbitrary")),
    )(q3, tm, mp, mn)

    pos_sum = partials[:, 0, 0]
    neg_sum = partials[:, 0, 1]
    pos_cnt = partials[:, 0, 2]
    neg_cnt = partials[:, 0, 3]

    # PyTorch loop skips samples with no positives or no negatives and averages
    # over the remaining ones.
    valid = (pos_cnt > 0.5) & (neg_cnt > 0.5)
    numerator = pos_sum
    denominator = pos_sum + neg_sum
    loss_i = -jnp.log(numerator / (denominator + 1e-8))
    n_valid = jnp.sum(valid.astype(jnp.float32))
    # TODO(synk): if every sample is skipped the PyTorch code raises ZeroDivisionError;
    # here that case yields nan instead.
    return jnp.sum(jnp.where(valid, loss_i, 0.0)) / n_valid


# ----------------------------------------------------------------------------
# Pure numpy reference (mirrors the PyTorch forward exactly)
# ----------------------------------------------------------------------------
def reference_contrast_loss(pos_query, tmap, mask_pos, mask_neg, tao=1.0):
    pq = np.asarray(pos_query, np.float64)
    tm = np.asarray(tmap, np.float64)
    mp = np.asarray(mask_pos, bool)
    mn = np.asarray(mask_neg, bool)
    losses = []
    for i in range(tm.shape[0]):
        tmp1 = tm[i][mp[i]]
        tmp2 = tm[i][mn[i]]
        if tmp1.shape[0] == 0 or tmp2.shape[0] == 0:
            continue
        pos = tmp1 / np.linalg.norm(tmp1, axis=-1, keepdims=True)
        neg = tmp2 / np.linalg.norm(tmp2, axis=-1, keepdims=True)
        q = pq[i:i + 1]
        qn = q / (np.linalg.norm(q, axis=-1, keepdims=True) + 1e-8)
        posn = pos / (np.linalg.norm(pos, axis=-1, keepdims=True) + 1e-8)
        negn = neg / (np.linalg.norm(neg, axis=-1, keepdims=True) + 1e-8)
        positive_sim = qn @ posn.T
        negative_sim = qn @ negn.T
        numerator = np.exp(positive_sim / tao).sum(axis=-1)
        denominator = np.exp(
            np.concatenate([positive_sim, negative_sim], axis=-1) / tao).sum(axis=-1)
        losses.append(-np.log(numerator / (denominator + 1e-8)))
    return float(np.asarray(sum(losses) / len(losses)).squeeze())


# ----------------------------------------------------------------------------
if __name__ == "__main__":
    B, S, H = 2, 16, 32
    tao = 1.0

    key = jax.random.PRNGKey(0)
    k_q, k_t = jax.random.split(key)
    pos_query = jax.random.normal(k_q, (B, H), jnp.float32)
    tmap = jax.random.normal(k_t, (B, S, S, H), jnp.float32)

    # Deterministic, non-empty pos/neg masks on the upper-triangular proposal map.
    r = np.arange(S)
    upper = r[:, None] <= r[None, :]
    width = r[None, :] - r[:, None]
    mask_pos_np = np.broadcast_to(upper & (width < 3), (B, S, S)).copy()
    mask_neg_np = np.broadcast_to(upper & (width >= 8), (B, S, S)).copy()
    mask2d_pos = jnp.asarray(mask_pos_np)
    mask2d_neg = jnp.asarray(mask_neg_np)

    loss = contrast_loss(pos_query, tmap, mask2d_pos, mask2d_neg, tao=tao, seq_tile=8)
    loss = jax.block_until_ready(loss)

    ref = reference_contrast_loss(np.asarray(pos_query), np.asarray(tmap),
                                  mask_pos_np, mask_neg_np, tao=tao)
    np.testing.assert_allclose(float(loss), ref, rtol=1e-4, atol=1e-5)

    print("KERNEL_OK")
</pallas_src>

<mosaic_0001>
module attributes {stable_mosaic.version = 11 : i64} {
  func.func @contrast_partial_kernel(%arg0: i32, %arg1: i32, %arg2: memref<1x1x32xf32, #tpu.memory_space<vmem>>, %arg3: memref<1x8x16x32xf32, #tpu.memory_space<vmem>>, %arg4: memref<1x8x16xf32, #tpu.memory_space<vmem>>, %arg5: memref<1x8x16xf32, #tpu.memory_space<vmem>>, %arg6: memref<1x1x128xf32, #tpu.memory_space<vmem>>) attributes {dimension_semantics = [#tpu.dimension_semantics<parallel>, #tpu.dimension_semantics<arbitrary>], iteration_bounds = array<i64: 2, 2>, scalar_prefetch = 0 : i64, scratch_operands = 0 : i64, tpu.core_type = #tpu.core_type<tc>, window_params = [{transform_indices = @transform_0, window_bounds = array<i64: 1, 1, 32>}, {transform_indices = @transform_1, window_bounds = array<i64: 1, 8, 16, 32>}, {transform_indices = @transform_2, window_bounds = array<i64: 1, 8, 16>}, {transform_indices = @transform_3, window_bounds = array<i64: 1, 8, 16>}, {transform_indices = @transform_4, window_bounds = array<i64: 1, 1, 128>}]} {
    %c0_i32 = arith.constant 0 : i32
    %0 = arith.cmpi eq, %arg1, %c0_i32 : i32
    %1 = arith.extui %0 : i1 to i32
    %c0_i32_0 = arith.constant 0 : i32
    %2 = arith.cmpi ne, %1, %c0_i32_0 : i32
    scf.if %2 {
      %cst_32 = arith.constant 0.000000e+00 : f32
      %75 = vector.broadcast %cst_32 : f32 to vector<1x1x128xf32>
      %c0_33 = arith.constant 0 : index
      %c0_34 = arith.constant 0 : index
      %c0_35 = arith.constant 0 : index
      %76 = vector.load %arg6[%c0_33, %c0_34, %c0_35] : memref<1x1x128xf32, #tpu.memory_space<vmem>>, vector<1x1x128xf32>
      tpu.vector_store %arg6[%c0_33, %c0_34, %c0_35], %75 {strides = array<i32>} : memref<1x1x128xf32, #tpu.memory_space<vmem>>, vector<1x1x128xf32>,
    } else {
    }
    %c0 = arith.constant 0 : index
    %c0_1 = arith.constant 0 : index
    %c0_2 = arith.constant 0 : index
    %3 = vector.load %arg2[%c0, %c0_1, %c0_2] : memref<1x1x32xf32, #tpu.memory_space<vmem>>, vector<1x1x32xf32>
    %4 = vector.shape_cast %3 : vector<1x1x32xf32> to vector<1x32xf32>
    %5 = arith.mulf %4, %4 : vector<1x32xf32>
    %cst = arith.constant dense<0.000000e+00> : vector<1xf32>
    %6 = vector.multi_reduction <add>, %5, %cst [1] : vector<1x32xf32> to vector<1xf32>
    %7 = vector.shape_cast %6 : vector<1xf32> to vector<1x1xf32>
    %8 = math.sqrt %7 : vector<1x1xf32>
    %cst_3 = arith.constant 9.99999993E-9 : f32
    %9 = vector.broadcast %cst_3 : f32 to vector<1x1xf32>
    %10 = arith.addf %8, %9 : vector<1x1xf32>
    %11 = vector.broadcast %10 : vector<1x1xf32> to vector<1x32xf32>
    %12 = arith.divf %4, %11 : vector<1x32xf32>
    %c0_4 = arith.constant 0 : index
    %c0_5 = arith.constant 0 : index
    %c0_6 = arith.constant 0 : index
    %c0_7 = arith.constant 0 : index
    %13 = vector.load %arg3[%c0_4, %c0_5, %c0_6, %c0_7] : memref<1x8x16x32xf32, #tpu.memory_space<vmem>>, vector<1x8x16x32xf32>
    %14 = vector.shape_cast %13 : vector<1x8x16x32xf32> to vector<8x16x32xf32>
    %15 = vector.shape_cast %12 : vector<1x32xf32> to vector<1x1x32xf32>
    %16 = vector.broadcast %15 : vector<1x1x32xf32> to vector<8x16x32xf32>
    %17 = arith.mulf %14, %16 : vector<8x16x32xf32>
    %cst_8 = arith.constant dense<0.000000e+00> : vector<8x16xf32>
    %18 = vector.multi_reduction <add>, %17, %cst_8 [2] : vector<8x16x32xf32> to vector<8x16xf32>
    %19 = arith.mulf %14, %14 : vector<8x16x32xf32>
    %cst_9 = arith.constant dense<0.000000e+00> : vector<8x16xf32>
    %20 = vector.multi_reduction <add>, %19, %cst_9 [2] : vector<8x16x32xf32> to vector<8x16xf32>
    %21 = math.sqrt %20 : vector<8x16xf32>
    %cst_10 = arith.constant 1.000000e-30 : f32
    %22 = vector.broadcast %cst_10 : f32 to vector<8x16xf32>
    %23 = arith.maximumf %21, %22 : vector<8x16xf32>
    %cst_11 = arith.constant 1.000000e+00 : f32
    %24 = vector.broadcast %cst_11 : f32 to vector<8x16xf32>
    %25 = arith.mulf %23, %24 : vector<8x16xf32>
    %cst_12 = arith.constant 1.000000e+00 : f32
    %26 = vector.broadcast %cst_12 : f32 to vector<8x16xf32>
    %27 = arith.divf %26, %25 : vector<8x16xf32>
    %28 = arith.mulf %18, %27 : vector<8x16xf32>
    %cst_13 = arith.constant 1.000000e+00 : f32
    %29 = vector.broadcast %cst_13 : f32 to vector<8x16xf32>
    %30 = arith.mulf %28, %29 : vector<8x16xf32>
    %31 = math.exp %30 : vector<8x16xf32>
    %c0_14 = arith.constant 0 : index
    %c0_15 = arith.constant 0 : index
    %c0_16 = arith.constant 0 : index
    %32 = vector.load %arg4[%c0_14, %c0_15, %c0_16] : memref<1x8x16xf32, #tpu.memory_space<vmem>>, vector<1x8x16xf32>
    %33 = vector.shape_cast %32 : vector<1x8x16xf32> to vector<8x16xf32>
    %c0_17 = arith.constant 0 : index
    %c0_18 = arith.constant 0 : index
    %c0_19 = arith.constant 0 : index
    %34 = vector.load %arg5[%c0_17, %c0_18, %c0_19] : memref<1x8x16xf32, #tpu.memory_space<vmem>>, vector<1x8x16xf32>
    %35 = vector.shape_cast %34 : vector<1x8x16xf32> to vector<8x16xf32>
    %36 = arith.mulf %31, %33 : vector<8x16xf32>
    %37 = vector.shape_cast %36 : vector<8x16xf32> to vector<1x8x16xf32>
    %cst_20 = arith.constant dense<0.000000e+00> : vector<1xf32>
    %38 = vector.multi_reduction <add>, %37, %cst_20 [1, 2] : vector<1x8x16xf32> to vector<1xf32>
    %39 = vector.shape_cast %38 : vector<1xf32> to vector<1x1x1xf32>
    %40 = vector.extract %39[0, 0, 0] : f32 from vector<1x1x1xf32>
    %41 = arith.mulf %31, %35 : vector<8x16xf32>
    %42 = vector.shape_cast %41 : vector<8x16xf32> to vector<1x8x16xf32>
    %cst_21 = arith.constant dense<0.000000e+00> : vector<1xf32>
    %43 = vector.multi_reduction <add>, %42, %cst_21 [1, 2] : vector<1x8x16xf32> to vector<1xf32>
    %44 = vector.shape_cast %43 : vector<1xf32> to vector<1x1x1xf32>
    %45 = vector.extract %44[0, 0, 0] : f32 from vector<1x1x1xf32>
    %46 = vector.shape_cast %33 : vector<8x16xf32> to vector<1x8x16xf32>
    %cst_22 = arith.constant dense<0.000000e+00> : vector<1xf32>
    %47 = vector.multi_reduction <add>, %46, %cst_22 [1, 2] : vector<1x8x16xf32> to vector<1xf32>
    %48 = vector.shape_cast %47 : vector<1xf32> to vector<1x1x1xf32>
    %49 = vector.extract %48[0, 0, 0] : f32 from vector<1x1x1xf32>
    %50 = vector.shape_cast %35 : vector<8x16xf32> to vector<1x8x16xf32>
    %cst_23 = arith.constant dense<0.000000e+00> : vector<1xf32>
    %51 = vector.multi_reduction <add>, %50, %cst_23 [1, 2] : vector<1x8x16xf32> to vector<1xf32>
    %52 = vector.shape_cast %51 : vector<1xf32> to vector<1x1x1xf32>
    %53 = vector.extract %52[0, 0, 0] : f32 from vector<1x1x1xf32>
    %54 = tpu.iota {dimensions = array<i32: 2>} : vector<1x1x128xi32>
    %cst_24 = arith.constant 0.000000e+00 : f32
    %55 = vector.broadcast %cst_24 : f32 to vector<1x1x128xf32>
    %c0_i32_25 = arith.constant 0 : i32
    %56 = vector.broadcast %c0_i32_25 : i32 to vector<1x1x128xi32>
    %57 = arith.cmpi eq, %54, %56 : vector<1x1x128xi32>
    %58 = vector.broadcast %40 : f32 to vector<1x1x128xf32>
    %59 = arith.select %57, %58, %55 : vector<1x1x128xi1>, vector<1x1x128xf32>
    %c1_i32 = arith.constant 1 : i32
    %60 = vector.broadcast %c1_i32 : i32 to vector<1x1x128xi32>
    %61 = arith.cmpi eq, %54, %60 : vector<1x1x128xi32>
    %62 = vector.broadcast %45 : f32 to vector<1x1x128xf32>
    %63 = arith.select %61, %62, %59 : vector<1x1x128xi1>, vector<1x1x128xf32>
    %c2_i32 = arith.constant 2 : i32
    %64 = vector.broadcast %c2_i32 : i32 to vector<1x1x128xi32>
    %65 = arith.cmpi eq, %54, %64 : vector<1x1x128xi32>
    %66 = vector.broadcast %49 : f32 to vector<1x1x128xf32>
    %67 = arith.select %65, %66, %63 : vector<1x1x128xi1>, vector<1x1x128xf32>
    %c3_i32 = arith.constant 3 : i32
    %68 = vector.broadcast %c3_i32 : i32 to vector<1x1x128xi32>
    %69 = arith.cmpi eq, %54, %68 : vector<1x1x128xi32>
    %70 = vector.broadcast %53 : f32 to vector<1x1x128xf32>
    %71 = arith.select %69, %70, %67 : vector<1x1x128xi1>, vector<1x1x128xf32>
    %c0_26 = arith.constant 0 : index
    %c0_27 = arith.constant 0 : index
    %c0_28 = arith.constant 0 : index
    %72 = vector.load %arg6[%c0_26, %c0_27, %c0_28] : memref<1x1x128xf32, #tpu.memory_space<vmem>>, vector<1x1x128xf32>
    %73 = arith.addf %72, %71 : vector<1x1x128xf32>
    %c0_29 = arith.constant 0 : index
    %c0_30 = arith.constant 0 : index
    %c0_31 = arith.constant 0 : index
    %74 = vector.load %arg6[%c0_29, %c0_30, %c0_31] : memref<1x1x128xf32, #tpu.memory_space<vmem>>, vector<1x1x128xf32>
    tpu.vector_store %arg6[%c0_29, %c0_30, %c0_31], %73 {strides = array<i32>} : memref<1x1x128xf32, #tpu.memory_space<vmem>>, vector<1x1x128xf32>,
    return
  }
  func.func @transform_0(%arg0: i32, %arg1: i32) -> (i32, i32, i32) {
    %c0_i32 = arith.constant 0 : i32
    %c0_i32_0 = arith.constant 0 : i32
    %c0_i32_1 = arith.constant 0 : i32
    return %arg0, %c0_i32, %c0_i32_0 : i32, i32, i32
  }
  func.func @transform_1(%arg0: i32, %arg1: i32) -> (i32, i32, i32, i32) {
    %c0_i32 = arith.constant 0 : i32
    %c0_i32_0 = arith.constant 0 : i32
    %c0_i32_1 = arith.constant 0 : i32
    return %arg0, %arg1, %c0_i32, %c0_i32_0 : i32, i32, i32, i32
  }
  func.func @transform_2(%arg0: i32, %arg1: i32) -> (i32, i32, i32) {
    %c0_i32 = arith.constant 0 : i32
    %c0_i32_0 = arith.constant 0 : i32
    return %arg0, %arg1, %c0_i32 : i32, i32, i32
  }
  func.func @transform_3(%arg0: i32, %arg1: i32) -> (i32, i32, i32) {
    %c0_i32 = arith.constant 0 : i32
    %c0_i32_0 = arith.constant 0 : i32
    return %arg0, %arg1, %c0_i32 : i32, i32, i32
  }
  func.func @transform_4(%arg0: i32, %arg1: i32) -> (i32, i32, i32) {
    %c0_i32 = arith.constant 0 : i32
    %c0_i32_0 = arith.constant 0 : i32
    %c0_i32_1 = arith.constant 0 : i32
    return %arg0, %c0_i32, %c0_i32_0 : i32, i32, i32
  }
}

</mosaic_0001>

<llo_original>
// kernel: tpu_custom_call.1
$region0: #{tpu_custom_call.1}
  #allocation0 [shape = 'u32[]', space=smem, size = 0x4, offset = 0x4, fixed_abs, tag = 'smem constant byte address 0x4 - core index']
  #allocation1 [shape = 'u32[144,128]{1,0:T(1,128)}', space=vmem, size = 0x12000, scoped, tag = 'internal scratch']
  %s0 = inlined_call_operand.hbm [shape: f32[2,1,32], index: 0, kind: input, shape index: {}]
  %s1 = inlined_call_operand.hbm [shape: f32[2,16,16,32], index: 1, kind: input, shape index: {}]
  %s2 = inlined_call_operand.hbm [shape: f32[2,16,16], index: 2, kind: input, shape index: {}]
  %s3 = inlined_call_operand.hbm [shape: f32[2,16,16], index: 3, kind: input, shape index: {}]
  %s4 = inlined_call_operand.hbm [shape: f32[2,1,128], index: 4, kind: output, shape index: {}]
  %s5 = sld [smem:[#allocation0]]
  $region69: #{tpu_custom_call.1} parent=0
    _
  %s7 = ssub.s32 1, %s5
  %s8 = scalar_select 0, %s7, %s5
  $region1: #{tpu_custom_call.1} parent=0
    #allocation2 [shape = 'u8[1024]{0}', space=vmem, size = 0x400, scoped, tag = 'input window, operand 0']
    #allocation3 [shape = 's32[2]{0}', space=sflag, size = 0x8, scoped, tag = 'scoped memory for tpu_custom_call.1']
    #allocation4 [shape = 's32[2]{0}', space=sflag, size = 0x8, scoped, tag = 'scoped memory for tpu_custom_call.1']
    #allocation5 [shape = 'u8[131072]{0}', space=vmem, size = 0x20000, scoped, tag = 'input window, operand 1']
    #allocation6 [shape = 's32[2]{0}', space=sflag, size = 0x8, scoped, tag = 'scoped memory for tpu_custom_call.1']
    #allocation7 [shape = 'u8[8192]{0}', space=vmem, size = 0x2000, scoped, tag = 'input window, operand 2']
    #allocation8 [shape = 'u8[8192]{0}', space=vmem, size = 0x2000, scoped, tag = 'input window, operand 3']
    #allocation9 [shape = 's32[2]{0}', space=sflag, size = 0x8, scoped, tag = 'scoped memory for tpu_custom_call.1']
    #allocation10 [shape = 'u8[1024]{0}', space=vmem, size = 0x400, scoped, tag = 'output window, operand 0']
    %9 = vsyncpa [#allocation3], 0
    %s10 = scalar_lea.sflag [#allocation3], 1
    %11 = vsyncpa %s10, 0
    %12 = vsyncpa [#allocation6], 0
    %s13 = scalar_lea.sflag [#allocation6], 1
    %14 = vsyncpa %s13, 0
    %15 = vsyncpa [#allocation9], 0
    %s16 = scalar_lea.sflag [#allocation9], 1
    %17 = vsyncpa %s16, 0
    %18 = vsyncpa [#allocation4], 0
    %s19 = scalar_lea.sflag [#allocation4], 1
    %20 = vsyncpa %s19, 0
    loop: start=0, step=1, limit=6
    $region2: #{tpu_custom_call.1} parent=1 // loop_pre_header
      _
    $region3: #{tpu_custom_call.1} parent=1 // loop_header
      %s22 = sphi 0, %s26
      %p23 = scmp.ge.s32.totalorder %s22, 6
      %s29 = sphi 0, %s41
      %s30 = sphi 0, %s37
      %s31 = sphi 0, %s29
      %s32 = sphi 0, %s30
      %s33 = sphi 0, %s31
      %s34 = sphi 0, %s32
      %s44 = sphi 0, %s46
      %s47 = sphi 0, %s44
      %s48 = sphi 0, %s47
      %s64 = sphi 0, %s48
      %s72 = sphi 0, %s74
      %s75 = sphi 0, %s72
      %s76 = sphi 0, %s75
      %s92 = sphi 0, %s76
      %s100 = sphi 0, %s102
      %s103 = sphi 0, %s100
      %s104 = sphi 0, %s103
      %s120 = sphi 0, %s104
      %s128 = sphi 0, %s130
      %s131 = sphi 0, %s128
      %s132 = sphi 0, %s131
      %s148 = sphi 0, %s132
      %s154 = sphi 0, %s156
      %s157 = sphi 0, %s154
      %s158 = sphi 0, %s157
      %s174 = sphi 0, %s158
    $region4: #{tpu_custom_call.1} parent=1 // loop_header_branch
      %25 = sbr.rel (%p23) target = $region8
    $region5: #{tpu_custom_call.1} parent=1 // loop_body
      %s27 = ssub.s32 %s22, 1
      %s28 = ssub.s32 %s22, 2
      %s35 = sadd.s32 1, %s30
      %p36 = scmp.ge.s32.totalorder %s35, 2
      %s37 = scalar_select %p36, 0, %s35
      %s38 = sadd.s32 1, %s29
      %s39 = scalar_select %p36, %s38, %s29
      %p40 = scmp.ge.s32.totalorder %s39, 2
      %s41 = scalar_select %p40, 0, %s39
      %s42 = ssub.s32 %s29, %s41
      %p43 = scmp.eq.s32.totalorder %s42, 0
      %s45 = sadd.s32 %s44, 1
      %s46 = scalar_select %p43, %s44, %s45
      %p49 = pneg %p43
      %p50 = scmp.eq.s32.totalorder %s22, 3
      %p51 = por %p49, %p50
      %p52 = scmp.ne.s32.totalorder %s44, %s47
      %p53 = scmp.eq.s32.totalorder %s22, 0
      %p54 = por %p52, %p53
      %p55 = scmp.ne.s32.totalorder %s44, %s47
      %p56 = scmp.eq.s32.totalorder %s27, 3
      %p57 = por %p55, %p56
      %p58 = scmp.ne.s32.totalorder %s47, %s48
      %p59 = scmp.eq.s32.totalorder %s27, 0
      %p60 = por %p58, %p59
      %p61 = scmp.ne.s32.totalorder %s47, %s48
      %p62 = scmp.eq.s32.totalorder %s28, 3
      %p63 = por %p61, %p62
      %p65 = scmp.ne.s32.totalorder %s48, %s64
      %p66 = scmp.eq.s32.totalorder %s28, 0
      %p67 = por %p65, %p66
      %s68 = ssub.s32 %s29, %s41
      %s69 = ssub.s32 %s30, %s37
      %s70 = sor.u32 %s68, %s69
      %p71 = scmp.eq.s32.totalorder %s70, 0
      %s73 = sadd.s32 %s72, 1
      %s74 = scalar_select %p71, %s72, %s73
      %p77 = pneg %p71
      %p78 = scmp.eq.s32.totalorder %s22, 3
      %p79 = por %p77, %p78
      %p80 = scmp.ne.s32.totalorder %s72, %s75
      %p81 = scmp.eq.s32.totalorder %s22, 0
      %p82 = por %p80, %p81
      %p83 = scmp.ne.s32.totalorder %s72, %s75
      %p84 = scmp.eq.s32.totalorder %s27, 3
      %p85 = por %p83, %p84
      %p86 = scmp.ne.s32.totalorder %s75, %s76
      %p87 = scmp.eq.s32.totalorder %s27, 0
      %p88 = por %p86, %p87
      %p89 = scmp.ne.s32.totalorder %s75, %s76
      %p90 = scmp.eq.s32.totalorder %s28, 3
      %p91 = por %p89, %p90
      %p93 = scmp.ne.s32.totalorder %s76, %s92
      %p94 = scmp.eq.s32.totalorder %s28, 0
      %p95 = por %p93, %p94
      %s96 = ssub.s32 %s29, %s41
      %s97 = ssub.s32 %s30, %s37
      %s98 = sor.u32 %s96, %s97
      %p99 = scmp.eq.s32.totalorder %s98, 0
      %s101 = sadd.s32 %s100, 1
      %s102 = scalar_select %p99, %s100, %s101
      %p105 = pneg %p99
      %p106 = scmp.eq.s32.totalorder %s22, 3
      %p107 = por %p105, %p106
      %p108 = scmp.ne.s32.totalorder %s100, %s103
      %p109 = scmp.eq.s32.totalorder %s22, 0
      %p110 = por %p108, %p109
      %p111 = scmp.ne.s32.totalorder %s100, %s103
      %p112 = scmp.eq.s32.totalorder %s27, 3
      %p113 = por %p111, %p112
      %p114 = scmp.ne.s32.totalorder %s103, %s104
      %p115 = scmp.eq.s32.totalorder %s27, 0
      %p116 = por %p114, %p115
      %p117 = scmp.ne.s32.totalorder %s103, %s104
      %p118 = scmp.eq.s32.totalorder %s28, 3
      %p119 = por %p117, %p118
      %p121 = scmp.ne.s32.totalorder %s104, %s120
      %p122 = scmp.eq.s32.totalorder %s28, 0
      %p123 = por %p121, %p122
      %s124 = ssub.s32 %s29, %s41
      %s125 = ssub.s32 %s30, %s37
      %s126 = sor.u32 %s124, %s125
      %p127 = scmp.eq.s32.totalorder %s126, 0
      %s129 = sadd.s32 %s128, 1
      %s130 = scalar_select %p127, %s128, %s129
      %p133 = pneg %p127
      %p134 = scmp.eq.s32.totalorder %s22, 3
      %p135 = por %p133, %p134
      %p136 = scmp.ne.s32.totalorder %s128, %s131
      %p137 = scmp.eq.s32.totalorder %s22, 0
      %p138 = por %p136, %p137
      %p139 = scmp.ne.s32.totalorder %s128, %s131
      %p140 = scmp.eq.s32.totalorder %s27, 3
      %p141 = por %p139, %p140
      %p142 = scmp.ne.s32.totalorder %s131, %s132
      %p143 = scmp.eq.s32.totalorder %s27, 0
      %p144 = por %p142, %p143
      %p145 = scmp.ne.s32.totalorder %s131, %s132
      %p146 = scmp.eq.s32.totalorder %s28, 3
      %p147 = por %p145, %p146
      %p149 = scmp.ne.s32.totalorder %s132, %s148
      %p150 = scmp.eq.s32.totalorder %s28, 0
      %p151 = por %p149, %p150
      %s152 = ssub.s32 %s29, %s41
      %p153 = scmp.eq.s32.totalorder %s152, 0
      %s155 = sadd.s32 %s154, 1
      %s156 = scalar_select %p153, %s154, %s155
      %p159 = pneg %p153
      %p160 = scmp.eq.s32.totalorder %s22, 3
      %p161 = por %p159, %p160
      %p162 = scmp.ne.s32.totalorder %s154, %s157
      %p163 = scmp.eq.s32.totalorder %s22, 0
      %p164 = por %p162, %p163
      %p165 = scmp.ne.s32.totalorder %s154, %s157
      %p166 = scmp.eq.s32.totalorder %s27, 3
      %p167 = por %p165, %p166
      %p168 = scmp.ne.s32.totalorder %s157, %s158
      %p169 = scmp.eq.s32.totalorder %s27, 0
      %p170 = por %p168, %p169
      %p171 = scmp.ne.s32.totalorder %s157, %s158
      %p172 = scmp.eq.s32.totalorder %s28, 3
      %p173 = por %p171, %p172
      %p175 = scmp.ne.s32.totalorder %s158, %s174
      %p176 = scmp.eq.s32.totalorder %s28, 0
      %p177 = por %p175, %p176
      %p178 = scmp.le.s32.totalorder 1, %s22
      %p179 = scmp.lt.s32.totalorder %s22, 5
      %p180 = pnand %p178, %p179
      %p181 = pneg %p180
      // Predicated region
      $region9: #{tpu_custom_call.1} parent=5 // pred_check
        _
      $region10: #{tpu_custom_call.1} parent=5 // pred_check_branch
        %183 = sbr.rel (%p180) target = $region12
      $region11: #{tpu_custom_call.1} parent=5 // pred_region
        %s184 = ssub.s32 %s22, 1
      $region12: #{tpu_custom_call.1} parent=5 // pred_fallthru
        _
      %p185 = scmp.lt.s32.totalorder %s22, 4
      // Predicated region
      $region13: #{tpu_custom_call.1} parent=5 // pred_check
        %p186 = pneg %p185
      $region14: #{tpu_custom_call.1} parent=5 // pred_check_branch
        %188 = sbr.rel (%p186) target = $region16
      $region15: #{tpu_custom_call.1} parent=5 // pred_region
        // Predicated region
        $region17: #{tpu_custom_call.1} parent=15 // pred_check
          %p189 = pneg %p54
        $region18: #{tpu_custom_call.1} parent=15 // pred_check_branch
          %191 = sbr.rel (%p189) target = $region20
        $region19: #{tpu_custom_call.1} parent=15 // pred_region
          %s192 = sand.u32 %s44, 1
          %s193 = scalar_lea.sflag [#allocation3], %s192
          %s194 = sand.u32 %s44, 1
          %s195 = scalar_lea.vmem [#allocation2], %s194
          %s197 = ssub.s32 16, 16
          %198 = vsyncadd %s193, %s197
          %s199 = smul.addr %s29, 16
          %s200 = scalar_lea.hbm %s0, %s199
          %s202 = sshll.u32 %s195, 4
          %s203 = int_to_ptr.vmem [resolvable:$true] %s202
          %205 = dma.hbm_to_vmem [thread:$0]  %s200, 16, %s203, %s193
        $region20: #{tpu_custom_call.1} parent=15 // pred_fallthru
          _
        // Predicated region
        $region21: #{tpu_custom_call.1} parent=15 // pred_check
          %p206 = pneg %p82
        $region22: #{tpu_custom_call.1} parent=15 // pred_check_branch
          %208 = sbr.rel (%p206) target = $region24
        $region23: #{tpu_custom_call.1} parent=15 // pred_region
          %s209 = sand.u32 %s22, 1
          %s210 = scalar_lea.sflag [#allocation6], %s209
          %s211 = sand.u32 %s72, 1
          %s212 = smul.addr %s211, 128
          %s213 = scalar_lea.vmem [#allocation5], %s212
          %s214 = smul.u32 8, %s30
          %s216 = ssub.s32 2048, 2048
          %217 = vsyncadd %s210, %s216
          %s218 = smul.addr %s214, 2
          %s219 = smul.addr %s29, 32
          %s220 = sadd.s32 %s218, %s219
          %s221 = smul.addr %s220, 128
          %s222 = scalar_lea.hbm %s1, %s221
          %s223 = sshll.u32 %s213, 4
          %s224 = int_to_ptr.vmem [resolvable:$true] %s223
          %229 = dma.hbm_to_vmem [thread:$0]  %s222, 2048, %s224, %s210, 128, 128, 8
        $region24: #{tpu_custom_call.1} parent=15 // pred_fallthru
          _
        // Predicated region
        $region25: #{tpu_custom_call.1} parent=15 // pred_check
          %p230 = pneg %p110
        $region26: #{tpu_custom_call.1} parent=15 // pred_check_branch
          %232 = sbr.rel (%p230) target = $region28
        $region27: #{tpu_custom_call.1} parent=15 // pred_region
          %s233 = sand.u32 %s22, 1
          %s234 = scalar_lea.sflag [#allocation6], %s233
          %s235 = sand.u32 %s100, 1
          %s236 = smul.addr %s235, 8
          %s237 = scalar_lea.vmem [#allocation7], %s236
          %s239 = ssub.s32 128, 128
          %240 = vsyncadd %s234, %s239
          %s241 = smul.addr %s29, 2
          %s242 = sadd.s32 %s30, %s241
          %s243 = smul.addr %s242, 128
          %s244 = scalar_lea.hbm %s2, %s243
          %s246 = sshll.u32 %s237, 4
          %s247 = int_to_ptr.vmem [resolvable:$true] %s246
          %249 = dma.hbm_to_vmem [thread:$0]  %s244, 128, %s247, %s234
        $region28: #{tpu_custom_call.1} parent=15 // pred_fallthru
          _
        // Predicated region
        $region29: #{tpu_custom_call.1} parent=15 // pred_check
          %p250 = pneg %p138
        $region30: #{tpu_custom_call.1} parent=15 // pred_check_branch
          %252 = sbr.rel (%p250) target = $region32
        $region31: #{tpu_custom_call.1} parent=15 // pred_region
          %s253 = sand.u32 %s128, 1
          %s254 = scalar_lea.sflag [#allocation9], %s253
          %s255 = sand.u32 %s128, 1
          %s256 = smul.addr %s255, 8
          %s257 = scalar_lea.vmem [#allocation8], %s256
          %s259 = ssub.s32 128, 128
          %260 = vsyncadd %s254, %s259
          %s261 = smul.addr %s29, 2
          %s262 = sadd.s32 %s30, %s261
          %s263 = smul.addr %s262, 128
          %s264 = scalar_lea.hbm %s3, %s263
          %s266 = sshll.u32 %s257, 4
          %s267 = int_to_ptr.vmem [resolvable:$true] %s266
          %269 = dma.hbm_to_vmem [thread:$0]  %s264, 128, %s267, %s254
        $region32: #{tpu_custom_call.1} parent=15 // pred_fallthru
          _
      $region16: #{tpu_custom_call.1} parent=5 // pred_fallthru
        _
      %p270 = scmp.le.s32.totalorder 1, %s22
      %p271 = scmp.lt.s32.totalorder %s22, 5
      %p272 = pnand %p270, %p271
      %p273 = pneg %p272
      // Predicated region
      $region33: #{tpu_custom_call.1} parent=5 // pred_check
        _
      $region34: #{tpu_custom_call.1} parent=5 // pred_check_branch
        %275 = sbr.rel (%p272) target = $region36
      $region35: #{tpu_custom_call.1} parent=5 // pred_region
        %s276 = ssub.s32 %s22, 1
        %s277 = sand.u32 %s47, 1
        %s278 = scalar_lea.sflag [#allocation3], %s277
        %s279 = sand.u32 %s47, 1
        %s280 = scalar_lea.vmem [#allocation2], %s279
        // Predicated region
        $region37: #{tpu_custom_call.1} parent=35 // pred_check
          %p281 = pneg %p60
        $region38: #{tpu_custom_call.1} parent=35 // pred_check_branch
          %283 = sbr.rel (%p281) target = $region40
        $region39: #{tpu_custom_call.1} parent=35 // pred_region
          %284 = dma.done %s278, 16
        $region40: #{tpu_custom_call.1} parent=35 // pred_fallthru
          _
        %s285 = sand.u32 %s27, 1
        %s286 = scalar_lea.sflag [#allocation6], %s285
        %s287 = sand.u32 %s75, 1
        %s288 = smul.addr %s287, 128
        %s289 = scalar_lea.vmem [#allocation5], %s288
        // Predicated region
        $region41: #{tpu_custom_call.1} parent=35 // pred_check
          %p290 = pneg %p88
        $region42: #{tpu_custom_call.1} parent=35 // pred_check_branch
          %292 = sbr.rel (%p290) target = $region44
        $region43: #{tpu_custom_call.1} parent=35 // pred_region
          %293 = dma.done %s286, 2048
        $region44: #{tpu_custom_call.1} parent=35 // pred_fallthru
          _
        %s294 = sand.u32 %s27, 1
        %s295 = scalar_lea.sflag [#allocation6], %s294
        %s296 = sand.u32 %s103, 1
        %s297 = smul.addr %s296, 8
        %s298 = scalar_lea.vmem [#allocation7], %s297
        // Predicated region
        $region45: #{tpu_custom_call.1} parent=35 // pred_check
          %p299 = pneg %p116
        $region46: #{tpu_custom_call.1} parent=35 // pred_check_branch
          %301 = sbr.rel (%p299) target = $region48
        $region47: #{tpu_custom_call.1} parent=35 // pred_region
          %302 = dma.done %s295, 128
        $region48: #{tpu_custom_call.1} parent=35 // pred_fallthru
          _
        %s303 = sand.u32 %s131, 1
        %s304 = scalar_lea.sflag [#allocation9], %s303
        %s305 = sand.u32 %s131, 1
        %s306 = smul.addr %s305, 8
        %s307 = scalar_lea.vmem [#allocation8], %s306
        // Predicated region
        $region49: #{tpu_custom_call.1} parent=35 // pred_check
          %p308 = pneg %p144
        $region50: #{tpu_custom_call.1} parent=35 // pred_check_branch
          %310 = sbr.rel (%p308) target = $region52
        $region51: #{tpu_custom_call.1} parent=35 // pred_region
          %311 = dma.done %s304, 128
        $region52: #{tpu_custom_call.1} parent=35 // pred_fallthru
          _
        %s312 = sand.u32 %s47, 1
        %s313 = scalar_lea.sflag [#allocation3], %s312
        %s314 = sand.u32 %s47, 1
        %s315 = scalar_lea.vmem [#allocation2], %s314
        %p316 = pneg %p60
        %p317 = pneg %p57
        %s318 = sand.u32 %s27, 1
        %s319 = scalar_lea.sflag [#allocation6], %s318
        %s320 = sand.u32 %s75, 1
        %s321 = smul.addr %s320, 128
        %s322 = scalar_lea.vmem [#allocation5], %s321
        %p323 = pneg %p88
        %p324 = pneg %p85
        %s325 = sand.u32 %s27, 1
        %s326 = scalar_lea.sflag [#allocation6], %s325
        %s327 = sand.u32 %s103, 1
        %s328 = smul.addr %s327, 8
        %s329 = scalar_lea.vmem [#allocation7], %s328
        %p330 = pneg %p116
        %p331 = pneg %p113
        %s332 = sand.u32 %s131, 1
        %s333 = scalar_lea.sflag [#allocation9], %s332
        %s334 = sand.u32 %s131, 1
        %s335 = smul.addr %s334, 8
        %s336 = scalar_lea.vmem [#allocation8], %s335
        %p337 = pneg %p144
        %p338 = pneg %p141
        %p339 = pneg %p170
        %p340 = pneg %p167
        %s341 = sand.u32 %s157, 1
        %s342 = scalar_lea.sflag [#allocation4], %s341
        %s343 = sand.u32 %s157, 1
        %s344 = scalar_lea.vmem [#allocation10], %s343
        %s345 = smul.u32 8, %s32
        %p346 = scmp.eq.s32.totalorder %s32, 0
        // Predicated region
        $region53: #{tpu_custom_call.1} parent=35 // pred_check
          %p347 = pneg %p346
        $region54: #{tpu_custom_call.1} parent=35 // pred_check_branch
          %349 = sbr.rel (%p347) target = $region56
        $region55: #{tpu_custom_call.1} parent=35 // pred_region
          %350 = vst [vmem:[%s344] sm:$0x1] 0.0
        $region56: #{tpu_custom_call.1} parent=35 // pred_fallthru
          _
        %v351 = vld [vmem:[%s280] sm:$0x1]
        %v352 = vmul.f32 %v351, %v351
        %vm353 = vcmask 253952
        %v354 = vsel %vm353, %v352, 0.0
        %355 = vadd.xlane.f32.xlu0 %v354
        %v356 = vpop.xlane.xlu0 %355
        %v357 = vrsqrt.pop %v356
        %v358 = vmul.f32 %v356, %v357
        %vm359 = vcmp.eq.f32.partialorder %v356, inf
        %v360 = vsel %vm359, %v356, %v358
        %vm361 = vcmp.eq.f32.partialorder %v356, 0.0
        %v362 = vand.u32 %v356, 2147483648
        %v363 = vsel %vm361, %v362, %v360
        %v364 = vadd.f32 %v363, 1e-08
        %v365 = vrcp.pop %v364
        %v366 = vmul.f32 %v351, %v365
        %v367 = vld [vmem:[%s289] sm:$0xff]
        %v368 = vld [vmem:[%s289 + $0x8] sm:$0xff]
        %v369 = vld [vmem:[%s289 + $0x10] sm:$0xff]
        %v370 = vld [vmem:[%s289 + $0x18] sm:$0xff]
        %v371 = vld [vmem:[%s289 + $0x20] sm:$0xff]
        %v372 = vld [vmem:[%s289 + $0x28] sm:$0xff]
        %v373 = vld [vmem:[%s289 + $0x30] sm:$0xff]
        %v374 = vld [vmem:[%s289 + $0x38] sm:$0xff]
        %v375 = vld [vmem:[%s289 + $0x40] sm:$0xff]
        %v376 = vld [vmem:[%s289 + $0x48] sm:$0xff]
        %v377 = vld [vmem:[%s289 + $0x50] sm:$0xff]
        %v378 = vld [vmem:[%s289 + $0x58] sm:$0xff]
        %v379 = vld [vmem:[%s289 + $0x60] sm:$0xff]
        %v380 = vld [vmem:[%s289 + $0x68] sm:$0xff]
        %v381 = vld [vmem:[%s289 + $0x70] sm:$0xff]
        %v382 = vld [vmem:[%s289 + $0x78] sm:$0xff]
        %v384 = vlaneseq
        %v385 = vshrl.u32 %v384, 7
        %v386 = vsub.s32 0, %v385
        %v387 = vrot.slane %v366, %v386
        %v389 = vmul.f32 %v367, %v387
        %v390 = vmul.f32 %v368, %v387
        %v391 = vmul.f32 %v369, %v387
        %v392 = vmul.f32 %v370, %v387
        %v393 = vmul.f32 %v371, %v387
        %v394 = vmul.f32 %v372, %v387
        %v395 = vmul.f32 %v373, %v387
        %v396 = vmul.f32 %v374, %v387
        %v397 = vmul.f32 %v375, %v387
        %v398 = vmul.f32 %v376, %v387
        %v399 = vmul.f32 %v377, %v387
        %v400 = vmul.f32 %v378, %v387
        %v401 = vmul.f32 %v379, %v387
        %v402 = vmul.f32 %v380, %v387
        %v403 = vmul.f32 %v381, %v387
        %v404 = vmul.f32 %v382, %v387
        %vm405 = vcmask 261120
        %v406 = vsel %vm405, %v389, 0.0
        %407 = vadd.xlane.f32.xlu0 %v406
        %v408 = vpop.xlane.xlu0 %407
        %v409 = vsel %vm405, %v390, 0.0
        %410 = vadd.xlane.f32.xlu0 %v409
        %v411 = vpop.xlane.xlu0 %410
        %v412 = vsel %vm405, %v391, 0.0
        %413 = vadd.xlane.f32.xlu0 %v412
        %v414 = vpop.xlane.xlu0 %413
        %v415 = vsel %vm405, %v392, 0.0
        %416 = vadd.xlane.f32.xlu0 %v415
        %v417 = vpop.xlane.xlu0 %416
        %v418 = vsel %vm405, %v393, 0.0
        %419 = vadd.xlane.f32.xlu0 %v418
        %v420 = vpop.xlane.xlu0 %419
        %v421 = vsel %vm405, %v394, 0.0
        %422 = vadd.xlane.f32.xlu0 %v421
        %v423 = vpop.xlane.xlu0 %422
        %v424 = vsel %vm405, %v395, 0.0
        %425 = vadd.xlane.f32.xlu0 %v424
        %v426 = vpop.xlane.xlu0 %425
        %v427 = vsel %vm405, %v396, 0.0
        %428 = vadd.xlane.f32.xlu0 %v427
        %v429 = vpop.xlane.xlu0 %428
        %v430 = vsel %vm405, %v397, 0.0
        %431 = vadd.xlane.f32.xlu0 %v430
        %v432 = vpop.xlane.xlu0 %431
        %v433 = vsel %vm405, %v398, 0.0
        %434 = vadd.xlane.f32.xlu0 %v433
        %v435 = vpop.xlane.xlu0 %434
        %v436 = vsel %vm405, %v399, 0.0
        %437 = vadd.xlane.f32.xlu0 %v436
        %v438 = vpop.xlane.xlu0 %437
        %v439 = vsel %vm405, %v400, 0.0
        %440 = vadd.xlane.f32.xlu0 %v439
        %v441 = vpop.xlane.xlu0 %440
        %v442 = vsel %vm405, %v401, 0.0
        %443 = vadd.xlane.f32.xlu0 %v442
        %v444 = vpop.xlane.xlu0 %443
        %v445 = vsel %vm405, %v402, 0.0
        %446 = vadd.xlane.f32.xlu0 %v445
        %v447 = vpop.xlane.xlu0 %446
        %v448 = vsel %vm405, %v403, 0.0
        %449 = vadd.xlane.f32.xlu0 %v448
        %v450 = vpop.xlane.xlu0 %449
        %v451 = vsel %vm405, %v404, 0.0
        %452 = vadd.xlane.f32.xlu0 %v451
        %v453 = vpop.xlane.xlu0 %452
        %v454 = vmul.f32 %v367, %v367
        %v455 = vmul.f32 %v368, %v368
        %v456 = vmul.f32 %v369, %v369
        %v457 = vmul.f32 %v370, %v370
        %v458 = vmul.f32 %v371, %v371
        %v459 = vmul.f32 %v372, %v372
        %v460 = vmul.f32 %v373, %v373
        %v461 = vmul.f32 %v374, %v374
        %v462 = vmul.f32 %v375, %v375
        %v463 = vmul.f32 %v376, %v376
        %v464 = vmul.f32 %v377, %v377
        %v465 = vmul.f32 %v378, %v378
        %v466 = vmul.f32 %v379, %v379
        %v467 = vmul.f32 %v380, %v380
        %v468 = vmul.f32 %v381, %v381
        %v469 = vmul.f32 %v382, %v382
        %v470 = vsel %vm405, %v454, 0.0
        %471 = vadd.xlane.f32.xlu0 %v470
        %v472 = vpop.xlane.xlu0 %471
        %v473 = vsel %vm405, %v455, 0.0
        %474 = vadd.xlane.f32.xlu0 %v473
        %v475 = vpop.xlane.xlu0 %474
        %v476 = vsel %vm405, %v456, 0.0
        %477 = vadd.xlane.f32.xlu0 %v476
        %v478 = vpop.xlane.xlu0 %477
        %v479 = vsel %vm405, %v457, 0.0
        %480 = vadd.xlane.f32.xlu0 %v479
        %v481 = vpop.xlane.xlu0 %480
        %v482 = vsel %vm405, %v458, 0.0
        %483 = vadd.xlane.f32.xlu0 %v482
        %v484 = vpop.xlane.xlu0 %483
        %v485 = vsel %vm405, %v459, 0.0
        %486 = vadd.xlane.f32.xlu0 %v485
        %v487 = vpop.xlane.xlu0 %486
        %v488 = vsel %vm405, %v460, 0.0
        %489 = vadd.xlane.f32.xlu0 %v488
        %v490 = vpop.xlane.xlu0 %489
        %v491 = vsel %vm405, %v461, 0.0
        %492 = vadd.xlane.f32.xlu0 %v491
        %v493 = vpop.xlane.xlu0 %492
        %v494 = vsel %vm405, %v462, 0.0
        %495 = vadd.xlane.f32.xlu0 %v494
        %v496 = vpop.xlane.xlu0 %495
        %v497 = vsel %vm405, %v463, 0.0
        %498 = vadd.xlane.f32.xlu0 %v497
        %v499 = vpop.xlane.xlu0 %498
        %v500 = vsel %vm405, %v464, 0.0
        %501 = vadd.xlane.f32.xlu0 %v500
        %v502 = vpop.xlane.xlu0 %501
        %v503 = vsel %vm405, %v465, 0.0
        %504 = vadd.xlane.f32.xlu0 %v503
        %v505 = vpop.xlane.xlu0 %504
        %v506 = vsel %vm405, %v466, 0.0
        %507 = vadd.xlane.f32.xlu0 %v506
        %v508 = vpop.xlane.xlu0 %507
        %v509 = vsel %vm405, %v467, 0.0
        %510 = vadd.xlane.f32.xlu0 %v509
        %v511 = vpop.xlane.xlu0 %510
        %v512 = vsel %vm405, %v468, 0.0
        %513 = vadd.xlane.f32.xlu0 %v512
        %v514 = vpop.xlane.xlu0 %513
        %v515 = vsel %vm405, %v469, 0.0
        %516 = vadd.xlane.f32.xlu0 %v515
        %v517 = vpop.xlane.xlu0 %516
        %v518 = vrsqrt.pop %v472
        %v519 = vmul.f32 %v472, %v518
        %vm520 = vcmp.eq.f32.partialorder %v472, inf
        %v521 = vsel %vm520, %v472, %v519
        %vm522 = vcmp.eq.f32.partialorder %v472, 0.0
        %v523 = vand.u32 %v472, 2147483648
        %v524 = vsel %vm522, %v523, %v521
        %v525 = vrsqrt.pop %v475
        %v526 = vmul.f32 %v475, %v525
        %vm527 = vcmp.eq.f32.partialorder %v475, inf
        %v528 = vsel %vm527, %v475, %v526
        %vm529 = vcmp.eq.f32.partialorder %v475, 0.0
        %v530 = vand.u32 %v475, 2147483648
        %v531 = vsel %vm529, %v530, %v528
        %v532 = vrsqrt.pop %v478
        %v533 = vmul.f32 %v478, %v532
        %vm534 = vcmp.eq.f32.partialorder %v478, inf
        %v535 = vsel %vm534, %v478, %v533
        %vm536 = vcmp.eq.f32.partialorder %v478, 0.0
        %v537 = vand.u32 %v478, 2147483648
        %v538 = vsel %vm536, %v537, %v535
        %v539 = vrsqrt.pop %v481
        %v540 = vmul.f32 %v481, %v539
        %vm541 = vcmp.eq.f32.partialorder %v481, inf
        %v542 = vsel %vm541, %v481, %v540
        %vm543 = vcmp.eq.f32.partialorder %v481, 0.0
        %v544 = vand.u32 %v481, 2147483648
        %v545 = vsel %vm543, %v544, %v542
        %v546 = vrsqrt.pop %v484
        %v547 = vmul.f32 %v484, %v546
        %vm548 = vcmp.eq.f32.partialorder %v484, inf
        %v549 = vsel %vm548, %v484, %v547
        %vm550 = vcmp.eq.f32.partialorder %v484, 0.0
        %v551 = vand.u32 %v484, 2147483648
        %v552 = vsel %vm550, %v551, %v549
        %v553 = vrsqrt.pop %v487
        %v554 = vmul.f32 %v487, %v553
        %vm555 = vcmp.eq.f32.partialorder %v487, inf
        %v556 = vsel %vm555, %v487, %v554
        %vm557 = vcmp.eq.f32.partialorder %v487, 0.0
        %v558 = vand.u32 %v487, 2147483648
        %v559 = vsel %vm557, %v558, %v556
        %v560 = vrsqrt.pop %v490
        %v561 = vmul.f32 %v490, %v560
        %vm562 = vcmp.eq.f32.partialorder %v490, inf
        %v563 = vsel %vm562, %v490, %v561
        %vm564 = vcmp.eq.f32.partialorder %v490, 0.0
        %v565 = vand.u32 %v490, 2147483648
        %v566 = vsel %vm564, %v565, %v563
        %v567 = vrsqrt.pop %v493
        %v568 = vmul.f32 %v493, %v567
        %vm569 = vcmp.eq.f32.partialorder %v493, inf
        %v570 = vsel %vm569, %v493, %v568
        %vm571 = vcmp.eq.f32.partialorder %v493, 0.0
        %v572 = vand.u32 %v493, 2147483648
        %v573 = vsel %vm571, %v572, %v570
        %v574 = vrsqrt.pop %v496
        %v575 = vmul.f32 %v496, %v574
        %vm576 = vcmp.eq.f32.partialorder %v496, inf
        %v577 = vsel %vm576, %v496, %v575
        %vm578 = vcmp.eq.f32.partialorder %v496, 0.0
        %v579 = vand.u32 %v496, 2147483648
        %v580 = vsel %vm578, %v579, %v577
        %v581 = vrsqrt.pop %v499
        %v582 = vmul.f32 %v499, %v581
        %vm583 = vcmp.eq.f32.partialorder %v499, inf
        %v584 = vsel %vm583, %v499, %v582
        %vm585 = vcmp.eq.f32.partialorder %v499, 0.0
        %v586 = vand.u32 %v499, 2147483648
        %v587 = vsel %vm585, %v586, %v584
        %v588 = vrsqrt.pop %v502
        %v589 = vmul.f32 %v502, %v588
        %vm590 = vcmp.eq.f32.partialorder %v502, inf
        %v591 = vsel %vm590, %v502, %v589
        %vm592 = vcmp.eq.f32.partialorder %v502, 0.0
        %v593 = vand.u32 %v502, 2147483648
        %v594 = vsel %vm592, %v593, %v591
        %v595 = vrsqrt.pop %v505
        %v596 = vmul.f32 %v505, %v595
        %vm597 = vcmp.eq.f32.partialorder %v505, inf
        %v598 = vsel %vm597, %v505, %v596
        %vm599 = vcmp.eq.f32.partialorder %v505, 0.0
        %v600 = vand.u32 %v505, 2147483648
        %v601 = vsel %vm599, %v600, %v598
        %v602 = vrsqrt.pop %v508
        %v603 = vmul.f32 %v508, %v602
        %vm604 = vcmp.eq.f32.partialorder %v508, inf
        %v605 = vsel %vm604, %v508, %v603
        %vm606 = vcmp.eq.f32.partialorder %v508, 0.0
        %v607 = vand.u32 %v508, 2147483648
        %v608 = vsel %vm606, %v607, %v605
        %v609 = vrsqrt.pop %v511
        %v610 = vmul.f32 %v511, %v609
        %vm611 = vcmp.eq.f32.partialorder %v511, inf
        %v612 = vsel %vm611, %v511, %v610
        %vm613 = vcmp.eq.f32.partialorder %v511, 0.0
        %v614 = vand.u32 %v511, 2147483648
        %v615 = vsel %vm613, %v614, %v612
        %v616 = vrsqrt.pop %v514
        %v617 = vmul.f32 %v514, %v616
        %vm618 = vcmp.eq.f32.partialorder %v514, inf
        %v619 = vsel %vm618, %v514, %v617
        %vm620 = vcmp.eq.f32.partialorder %v514, 0.0
        %v621 = vand.u32 %v514, 2147483648
        %v622 = vsel %vm620, %v621, %v619
        %v623 = vrsqrt.pop %v517
        %v624 = vmul.f32 %v517, %v623
        %vm625 = vcmp.eq.f32.partialorder %v517, inf
        %v626 = vsel %vm625, %v517, %v624
        %vm627 = vcmp.eq.f32.partialorder %v517, 0.0
        %v628 = vand.u32 %v517, 2147483648
        %v629 = vsel %vm627, %v628, %v626
        %v630 = vmax.f32 %v524, 1e-30
        %v631 = vmax.f32 %v531, 1e-30
        %v632 = vmax.f32 %v538, 1e-30
        %v633 = vmax.f32 %v545, 1e-30
        %v634 = vmax.f32 %v552, 1e-30
        %v635 = vmax.f32 %v559, 1e-30
        %v636 = vmax.f32 %v566, 1e-30
        %v637 = vmax.f32 %v573, 1e-30
        %v638 = vmax.f32 %v580, 1e-30
        %v639 = vmax.f32 %v587, 1e-30
        %v640 = vmax.f32 %v594, 1e-30
        %v641 = vmax.f32 %v601, 1e-30
        %v642 = vmax.f32 %v608, 1e-30
        %v643 = vmax.f32 %v615, 1e-30
        %v644 = vmax.f32 %v622, 1e-30
        %v645 = vmax.f32 %v629, 1e-30
        %v646 = vrcp.pop %v630
        %v647 = vmul.f32 1.0, %v646
        %v648 = vrcp.pop %v631
        %v649 = vmul.f32 1.0, %v648
        %v650 = vrcp.pop %v632
        %v651 = vmul.f32 1.0, %v650
        %v652 = vrcp.pop %v633
        %v653 = vmul.f32 1.0, %v652
        %v654 = vrcp.pop %v634
        %v655 = vmul.f32 1.0, %v654
        %v656 = vrcp.pop %v635
        %v657 = vmul.f32 1.0, %v656
        %v658 = vrcp.pop %v636
        %v659 = vmul.f32 1.0, %v658
        %v660 = vrcp.pop %v637
        %v661 = vmul.f32 1.0, %v660
        %v662 = vrcp.pop %v638
        %v663 = vmul.f32 1.0, %v662
        %v664 = vrcp.pop %v639
        %v665 = vmul.f32 1.0, %v664
        %v666 = vrcp.pop %v640
        %v667 = vmul.f32 1.0, %v666
        %v668 = vrcp.pop %v641
        %v669 = vmul.f32 1.0, %v668
        %v670 = vrcp.pop %v642
        %v671 = vmul.f32 1.0, %v670
        %v672 = vrcp.pop %v643
        %v673 = vmul.f32 1.0, %v672
        %v674 = vrcp.pop %v644
        %v675 = vmul.f32 1.0, %v674
        %v676 = vrcp.pop %v645
        %v677 = vmul.f32 1.0, %v676
        %v678 = vmul.f32 %v408, %v647
        %v679 = vmul.f32 %v411, %v649
        %v680 = vmul.f32 %v414, %v651
        %v681 = vmul.f32 %v417, %v653
        %v682 = vmul.f32 %v420, %v655
        %v683 = vmul.f32 %v423, %v657
        %v684 = vmul.f32 %v426, %v659
        %v685 = vmul.f32 %v429, %v661
        %v686 = vmul.f32 %v432, %v663
        %v687 = vmul.f32 %v435, %v665
        %v688 = vmul.f32 %v438, %v667
        %v689 = vmul.f32 %v441, %v669
        %v690 = vmul.f32 %v444, %v671
        %v691 = vmul.f32 %v447, %v673
        %v692 = vmul.f32 %v450, %v675
        %v693 = vmul.f32 %v453, %v677
        %v694 = vmul.f32 %v678, 1.442695
        %v695 = vpow.pop %v694
        %v696 = vmul.f32 %v679, 1.442695
        %v697 = vpow.pop %v696
        %v698 = vmul.f32 %v680, 1.442695
        %v699 = vpow.pop %v698
        %v700 = vmul.f32 %v681, 1.442695
        %v701 = vpow.pop %v700
        %v702 = vmul.f32 %v682, 1.442695
        %v703 = vpow.pop %v702
        %v704 = vmul.f32 %v683, 1.442695
        %v705 = vpow.pop %v704
        %v706 = vmul.f32 %v684, 1.442695
        %v707 = vpow.pop %v706
        %v708 = vmul.f32 %v685, 1.442695
        %v709 = vpow.pop %v708
        %v710 = vmul.f32 %v686, 1.442695
        %v711 = vpow.pop %v710
        %v712 = vmul.f32 %v687, 1.442695
        %v713 = vpow.pop %v712
        %v714 = vmul.f32 %v688, 1.442695
        %v715 = vpow.pop %v714
        %v716 = vmul.f32 %v689, 1.442695
        %v717 = vpow.pop %v716
        %v718 = vmul.f32 %v690, 1.442695
        %v719 = vpow.pop %v718
        %v720 = vmul.f32 %v691, 1.442695
        %v721 = vpow.pop %v720
        %v722 = vmul.f32 %v692, 1.442695
        %v723 = vpow.pop %v722
        %v724 = vmul.f32 %v693, 1.442695
        %v725 = vpow.pop %v724
        %v726 = vld [vmem:[%s298] sm:$0xff]
        %v727 = vld [vmem:[%s307] sm:$0xff]
        %v729 = vlaneseq
        %v730 = vshrl.u32 %v729, 7
        %v731 = vsub.s32 0, %v730
        %v732 = vrot.slane %v726, %v731
        %734 = vbcast.lane.b32.xlu0 %v732, 256
        %v735 = vpop.permute.xlu0 %734
        %s737 = sor.u32 256, 8
        %738 = vbcast.lane.b32.xlu0 %v732, %s737
        %v739 = vpop.permute.xlu0 %738
        %v740 = vlaneseq
        %v741 = vshrl.u32 %v740, 7
        %v742 = vsub.s32 1, %v741
        %v743 = vrot.slane %v726, %v742
        %745 = vbcast.lane.b32.xlu0 %v743, 256
        %v746 = vpop.permute.xlu0 %745
        %s748 = sor.u32 256, 8
        %749 = vbcast.lane.b32.xlu0 %v743, %s748
        %v750 = vpop.permute.xlu0 %749
        %v751 = vlaneseq
        %v752 = vshrl.u32 %v751, 7
        %v753 = vsub.s32 2, %v752
        %v754 = vrot.slane %v726, %v753
        %756 = vbcast.lane.b32.xlu0 %v754, 256
        %v757 = vpop.permute.xlu0 %756
        %s759 = sor.u32 256, 8
        %760 = vbcast.lane.b32.xlu0 %v754, %s759
        %v761 = vpop.permute.xlu0 %760
        %v762 = vlaneseq
        %v763 = vshrl.u32 %v762, 7
        %v764 = vsub.s32 3, %v763
        %v765 = vrot.slane %v726, %v764
        %767 = vbcast.lane.b32.xlu0 %v765, 256
        %v768 = vpop.permute.xlu0 %767
        %s770 = sor.u32 256, 8
        %771 = vbcast.lane.b32.xlu0 %v765, %s770
        %v772 = vpop.permute.xlu0 %771
        %v773 = vlaneseq
        %v774 = vshrl.u32 %v773, 7
        %v775 = vsub.s32 4, %v774
        %v776 = vrot.slane %v726, %v775
        %778 = vbcast.lane.b32.xlu0 %v776, 256
        %v779 = vpop.permute.xlu0 %778
        %s781 = sor.u32 256, 8
        %782 = vbcast.lane.b32.xlu0 %v776, %s781
        %v783 = vpop.permute.xlu0 %782
        %v784 = vlaneseq
        %v785 = vshrl.u32 %v784, 7
        %v786 = vsub.s32 5, %v785
        %v787 = vrot.slane %v726, %v786
        %789 = vbcast.lane.b32.xlu0 %v787, 256
        %v790 = vpop.permute.xlu0 %789
        %s792 = sor.u32 256, 8
        %793 = vbcast.lane.b32.xlu0 %v787, %s792
        %v794 = vpop.permute.xlu0 %793
        %v795 = vlaneseq
        %v796 = vshrl.u32 %v795, 7
        %v797 = vsub.s32 6, %v796
        %v798 = vrot.slane %v726, %v797
        %800 = vbcast.lane.b32.xlu0 %v798, 256
        %v801 = vpop.permute.xlu0 %800
        %s803 = sor.u32 256, 8
        %804 = vbcast.lane.b32.xlu0 %v798, %s803
        %v805 = vpop.permute.xlu0 %804
        %v806 = vlaneseq
        %v807 = vshrl.u32 %v806, 7
        %v808 = vsub.s32 7, %v807
        %v809 = vrot.slane %v726, %v808
        %811 = vbcast.lane.b32.xlu0 %v809, 256
        %v812 = vpop.permute.xlu0 %811
        %s814 = sor.u32 256, 8
        %815 = vbcast.lane.b32.xlu0 %v809, %s814
        %v816 = vpop.permute.xlu0 %815
        %v833 = vmul.f32 %v695, %v735
        %v834 = vmul.f32 %v697, %v739
        %v835 = vmul.f32 %v699, %v746
        %v836 = vmul.f32 %v701, %v750
        %v837 = vmul.f32 %v703, %v757
        %v838 = vmul.f32 %v705, %v761
        %v839 = vmul.f32 %v707, %v768
        %v840 = vmul.f32 %v709, %v772
        %v841 = vmul.f32 %v711, %v779
        %v842 = vmul.f32 %v713, %v783
        %v843 = vmul.f32 %v715, %v790
        %v844 = vmul.f32 %v717, %v794
        %v845 = vmul.f32 %v719, %v801
        %v846 = vmul.f32 %v721, %v805
        %v847 = vmul.f32 %v723, %v812
        %v848 = vmul.f32 %v725, %v816
        %865 = vset.pattern.permute.xlu0 0
        %866 = vperm.xlu0 %865, %v833
        %v867 = vpop.permute.xlu0 %866
        %868 = vset.pattern.permute.xlu0 0
        %869 = vperm.xlu0 %868, %v834
        %v870 = vpop.permute.xlu0 %869
        %871 = vset.pattern.permute.xlu0 0
        %872 = vperm.xlu0 %871, %v835
        %v873 = vpop.permute.xlu0 %872
        %874 = vset.pattern.permute.xlu0 0
        %875 = vperm.xlu0 %874, %v836
        %v876 = vpop.permute.xlu0 %875
        %877 = vset.pattern.permute.xlu0 0
        %878 = vperm.xlu0 %877, %v837
        %v879 = vpop.permute.xlu0 %878
        %880 = vset.pattern.permute.xlu0 0
        %881 = vperm.xlu0 %880, %v838
        %v882 = vpop.permute.xlu0 %881
        %883 = vset.pattern.permute.xlu0 0
        %884 = vperm.xlu0 %883, %v839
        %v885 = vpop.permute.xlu0 %884
        %886 = vset.pattern.permute.xlu0 0
        %887 = vperm.xlu0 %886, %v840
        %v888 = vpop.permute.xlu0 %887
        %889 = vset.pattern.permute.xlu0 0
        %890 = vperm.xlu0 %889, %v841
        %v891 = vpop.permute.xlu0 %890
        %892 = vset.pattern.permute.xlu0 0
        %893 = vperm.xlu0 %892, %v842
        %v894 = vpop.permute.xlu0 %893
        %895 = vset.pattern.permute.xlu0 0
        %896 = vperm.xlu0 %895, %v843
        %v897 = vpop.permute.xlu0 %896
        %898 = vset.pattern.permute.xlu0 0
        %899 = vperm.xlu0 %898, %v844
        %v900 = vpop.permute.xlu0 %899
        %901 = vset.pattern.permute.xlu0 0
        %902 = vperm.xlu0 %901, %v845
        %v903 = vpop.permute.xlu0 %902
        %904 = vset.pattern.permute.xlu0 0
        %905 = vperm.xlu0 %904, %v846
        %v906 = vpop.permute.xlu0 %905
        %907 = vset.pattern.permute.xlu0 0
        %908 = vperm.xlu0 %907, %v847
        %v909 = vpop.permute.xlu0 %908
        %910 = vset.pattern.permute.xlu0 0
        %911 = vperm.xlu0 %910, %v848
        %v912 = vpop.permute.xlu0 %911
        %v913 = vlaneseq
        %v914 = vand.u32 %v913, 127
        %v915 = vlaneseq
        %v916 = vshrl.u32 %v915, 7
        %v917 = vsub.s32 %v914, %v916
        %v918 = vrot.slane %v867, %v917
        %v919 = vadd.s32 %v914, 4294967288
        %v920 = vlaneseq
        %v921 = vshrl.u32 %v920, 7
        %v922 = vsub.s32 %v919, %v921
        %v923 = vrot.slane %v870, %v922
        %vm924 = vcmask 130112
        %v925 = vsel %vm924, %v923, %v918
        %v926 = vlaneseq
        %v927 = vshrl.u32 %v926, 7
        %v928 = vsub.s32 %v914, %v927
        %v929 = vrot.slane %v873, %v928
        %v930 = vlaneseq
        %v931 = vshrl.u32 %v930, 7
        %v932 = vsub.s32 %v919, %v931
        %v933 = vrot.slane %v876, %v932
        %v934 = vsel %vm924, %v933, %v929
        %v935 = vlaneseq
        %v936 = vshrl.u32 %v935, 7
        %v937 = vsub.s32 %v914, %v936
        %v938 = vrot.slane %v879, %v937
        %v939 = vlaneseq
        %v940 = vshrl.u32 %v939, 7
        %v941 = vsub.s32 %v919, %v940
        %v942 = vrot.slane %v882, %v941
        %v943 = vsel %vm924, %v942, %v938
        %v944 = vlaneseq
        %v945 = vshrl.u32 %v944, 7
        %v946 = vsub.s32 %v914, %v945
        %v947 = vrot.slane %v885, %v946
        %v948 = vlaneseq
        %v949 = vshrl.u32 %v948, 7
        %v950 = vsub.s32 %v919, %v949
        %v951 = vrot.slane %v888, %v950
        %v952 = vsel %vm924, %v951, %v947
        %v953 = vlaneseq
        %v954 = vshrl.u32 %v953, 7
        %v955 = vsub.s32 %v914, %v954
        %v956 = vrot.slane %v891, %v955
        %v957 = vlaneseq
        %v958 = vshrl.u32 %v957, 7
        %v959 = vsub.s32 %v919, %v958
        %v960 = vrot.slane %v894, %v959
        %v961 = vsel %vm924, %v960, %v956
        %v962 = vlaneseq
        %v963 = vshrl.u32 %v962, 7
        %v964 = vsub.s32 %v914, %v963
        %v965 = vrot.slane %v897, %v964
        %v966 = vlaneseq
        %v967 = vshrl.u32 %v966, 7
        %v968 = vsub.s32 %v919, %v967
        %v969 = vrot.slane %v900, %v968
        %v970 = vsel %vm924, %v969, %v965
        %v971 = vlaneseq
        %v972 = vshrl.u32 %v971, 7
        %v973 = vsub.s32 %v914, %v972
        %v974 = vrot.slane %v903, %v973
        %v975 = vlaneseq
        %v976 = vshrl.u32 %v975, 7
        %v977 = vsub.s32 %v919, %v976
        %v978 = vrot.slane %v906, %v977
        %v979 = vsel %vm924, %v978, %v974
        %v980 = vlaneseq
        %v981 = vshrl.u32 %v980, 7
        %v982 = vsub.s32 %v914, %v981
        %v983 = vrot.slane %v909, %v982
        %v984 = vlaneseq
        %v985 = vshrl.u32 %v984, 7
        %v986 = vsub.s32 %v919, %v985
        %v987 = vrot.slane %v912, %v986
        %v988 = vsel %vm924, %v987, %v983
        %vm989 = vcmask 1041409
        %v990 = vsel %vm989, %v934, %v925
        %vm991 = vcmask 1042434
        %v992 = vsel %vm991, %v943, %v990
        %vm993 = vcmask 1043459
        %v994 = vsel %vm993, %v952, %v992
        %vm995 = vcmask 1044484
        %v996 = vsel %vm995, %v961, %v994
        %vm997 = vcmask 1045509
        %v998 = vsel %vm997, %v970, %v996
        %vm999 = vcmask 1046534
        %v1000 = vsel %vm999, %v979, %v998
        %vm1001 = vcmask 1047559
        %v1002 = vsel %vm1001, %v988, %v1000
        %vm1004 = vcmask 130048
        %v1005 = vsel %vm1004, %v1002, 0.0
        %1006 = vadd.xlane.f32.xlu0 %v1005
        %v1007 = vpop.xlane.xlu0 %1006
        %v1008 = vrot.slane %v1007, 4
        %v1009 = vadd.f32 %v1007, %v1008
        %v1010 = vrot.slane %v1009, 2
        %v1011 = vadd.f32 %v1009, %v1010
        %v1012 = vrot.slane %v1011, 1
        %v1013 = vadd.f32 %v1011, %v1012
        %s1014 = vtos %v1013
        %v1016 = vlaneseq
        %v1017 = vshrl.u32 %v1016, 7
        %v1018 = vsub.s32 0, %v1017
        %v1019 = vrot.slane %v727, %v1018
        %1021 = vbcast.lane.b32.xlu0 %v1019, 256
        %v1022 = vpop.permute.xlu0 %1021
        %s1024 = sor.u32 256, 8
        %1025 = vbcast.lane.b32.xlu0 %v1019, %s1024
        %v1026 = vpop.permute.xlu0 %1025
        %v1027 = vlaneseq
        %v1028 = vshrl.u32 %v1027, 7
        %v1029 = vsub.s32 1, %v1028
        %v1030 = vrot.slane %v727, %v1029
        %1032 = vbcast.lane.b32.xlu0 %v1030, 256
        %v1033 = vpop.permute.xlu0 %1032
        %s1035 = sor.u32 256, 8
        %1036 = vbcast.lane.b32.xlu0 %v1030, %s1035
        %v1037 = vpop.permute.xlu0 %1036
        %v1038 = vlaneseq
        %v1039 = vshrl.u32 %v1038, 7
        %v1040 = vsub.s32 2, %v1039
        %v1041 = vrot.slane %v727, %v1040
        %1043 = vbcast.lane.b32.xlu0 %v1041, 256
        %v1044 = vpop.permute.xlu0 %1043
        %s1046 = sor.u32 256, 8
        %1047 = vbcast.lane.b32.xlu0 %v1041, %s1046
        %v1048 = vpop.permute.xlu0 %1047
        %v1049 = vlaneseq
        %v1050 = vshrl.u32 %v1049, 7
        %v1051 = vsub.s32 3, %v1050
        %v1052 = vrot.slane %v727, %v1051
        %1054 = vbcast.lane.b32.xlu0 %v1052, 256
        %v1055 = vpop.permute.xlu0 %1054
        %s1057 = sor.u32 256, 8
        %1058 = vbcast.lane.b32.xlu0 %v1052, %s1057
        %v1059 = vpop.permute.xlu0 %1058
        %v1060 = vlaneseq
        %v1061 = vshrl.u32 %v1060, 7
        %v1062 = vsub.s32 4, %v1061
        %v1063 = vrot.slane %v727, %v1062
        %1065 = vbcast.lane.b32.xlu0 %v1063, 256
        %v1066 = vpop.permute.xlu0 %1065
        %s1068 = sor.u32 256, 8
        %1069 = vbcast.lane.b32.xlu0 %v1063, %s1068
        %v1070 = vpop.permute.xlu0 %1069
        %v1071 = vlaneseq
        %v1072 = vshrl.u32 %v1071, 7
        %v1073 = vsub.s32 5, %v1072
        %v1074 = vrot.slane %v727, %v1073
        %1076 = vbcast.lane.b32.xlu0 %v1074, 256
        %v1077 = vpop.permute.xlu0 %1076
        %s1079 = sor.u32 256, 8
        %1080 = vbcast.lane.b32.xlu0 %v1074, %s1079
        %v1081 = vpop.permute.xlu0 %1080
        %v1082 = vlaneseq
        %v1083 = vshrl.u32 %v1082, 7
        %v1084 = vsub.s32 6, %v1083
        %v1085 = vrot.slane %v727, %v1084
        %1087 = vbcast.lane.b32.xlu0 %v1085, 256
        %v1088 = vpop.permute.xlu0 %1087
        %s1090 = sor.u32 256, 8
        %1091 = vbcast.lane.b32.xlu0 %v1085, %s1090
        %v1092 = vpop.permute.xlu0 %1091
        %v1093 = vlaneseq
        %v1094 = vshrl.u32 %v1093, 7
        %v1095 = vsub.s32 7, %v1094
        %v1096 = vrot.slane %v727, %v1095
        %1098 = vbcast.lane.b32.xlu0 %v1096, 256
        %v1099 = vpop.permute.xlu0 %1098
        %s1101 = sor.u32 256, 8
        %1102 = vbcast.lane.b32.xlu0 %v1096, %s1101
        %v1103 = vpop.permute.xlu0 %1102
        %v1120 = vmul.f32 %v695, %v1022
        %v1121 = vmul.f32 %v697, %v1026
        %v1122 = vmul.f32 %v699, %v1033
        %v1123 = vmul.f32 %v701, %v1037
        %v1124 = vmul.f32 %v703, %v1044
        %v1125 = vmul.f32 %v705, %v1048
        %v1126 = vmul.f32 %v707, %v1055
        %v1127 = vmul.f32 %v709, %v1059
        %v1128 = vmul.f32 %v711, %v1066
        %v1129 = vmul.f32 %v713, %v1070
        %v1130 = vmul.f32 %v715, %v1077
        %v1131 = vmul.f32 %v717, %v1081
        %v1132 = vmul.f32 %v719, %v1088
        %v1133 = vmul.f32 %v721, %v1092
        %v1134 = vmul.f32 %v723, %v1099
        %v1135 = vmul.f32 %v725, %v1103
        %1152 = vset.pattern.permute.xlu0 0
        %1153 = vperm.xlu0 %1152, %v1120
        %v1154 = vpop.permute.xlu0 %1153
        %1155 = vset.pattern.permute.xlu0 0
        %1156 = vperm.xlu0 %1155, %v1121
        %v1157 = vpop.permute.xlu0 %1156
        %1158 = vset.pattern.permute.xlu0 0
        %1159 = vperm.xlu0 %1158, %v1122
        %v1160 = vpop.permute.xlu0 %1159
        %1161 = vset.pattern.permute.xlu0 0
        %1162 = vperm.xlu0 %1161, %v1123
        %v1163 = vpop.permute.xlu0 %1162
        %1164 = vset.pattern.permute.xlu0 0
        %1165 = vperm.xlu0 %1164, %v1124
        %v1166 = vpop.permute.xlu0 %1165
        %1167 = vset.pattern.permute.xlu0 0
        %1168 = vperm.xlu0 %1167, %v1125
        %v1169 = vpop.permute.xlu0 %1168
        %1170 = vset.pattern.permute.xlu0 0
        %1171 = vperm.xlu0 %1170, %v1126
        %v1172 = vpop.permute.xlu0 %1171
        %1173 = vset.pattern.permute.xlu0 0
        %1174 = vperm.xlu0 %1173, %v1127
        %v1175 = vpop.permute.xlu0 %1174
        %1176 = vset.pattern.permute.xlu0 0
        %1177 = vperm.xlu0 %1176, %v1128
        %v1178 = vpop.permute.xlu0 %1177
        %1179 = vset.pattern.permute.xlu0 0
        %1180 = vperm.xlu0 %1179, %v1129
        %v1181 = vpop.permute.xlu0 %1180
        %1182 = vset.pattern.permute.xlu0 0
        %1183 = vperm.xlu0 %1182, %v1130
        %v1184 = vpop.permute.xlu0 %1183
        %1185 = vset.pattern.permute.xlu0 0
        %1186 = vperm.xlu0 %1185, %v1131
        %v1187 = vpop.permute.xlu0 %1186
        %1188 = vset.pattern.permute.xlu0 0
        %1189 = vperm.xlu0 %1188, %v1132
        %v1190 = vpop.permute.xlu0 %1189
        %1191 = vset.pattern.permute.xlu0 0
        %1192 = vperm.xlu0 %1191, %v1133
        %v1193 = vpop.permute.xlu0 %1192
        %1194 = vset.pattern.permute.xlu0 0
        %1195 = vperm.xlu0 %1194, %v1134
        %v1196 = vpop.permute.xlu0 %1195
        %1197 = vset.pattern.permute.xlu0 0
        %1198 = vperm.xlu0 %1197, %v1135
        %v1199 = vpop.permute.xlu0 %1198
        %v1200 = vlaneseq
        %v1201 = vshrl.u32 %v1200, 7
        %v1202 = vsub.s32 %v914, %v1201
        %v1203 = vrot.slane %v1154, %v1202
        %v1204 = vlaneseq
        %v1205 = vshrl.u32 %v1204, 7
        %v1206 = vsub.s32 %v919, %v1205
        %v1207 = vrot.slane %v1157, %v1206
        %v1208 = vsel %vm924, %v1207, %v1203
        %v1209 = vlaneseq
        %v1210 = vshrl.u32 %v1209, 7
        %v1211 = vsub.s32 %v914, %v1210
        %v1212 = vrot.slane %v1160, %v1211
        %v1213 = vlaneseq
        %v1214 = vshrl.u32 %v1213, 7
        %v1215 = vsub.s32 %v919, %v1214
        %v1216 = vrot.slane %v1163, %v1215
        %v1217 = vsel %vm924, %v1216, %v1212
        %v1218 = vlaneseq
        %v1219 = vshrl.u32 %v1218, 7
        %v1220 = vsub.s32 %v914, %v1219
        %v1221 = vrot.slane %v1166, %v1220
        %v1222 = vlaneseq
        %v1223 = vshrl.u32 %v1222, 7
        %v1224 = vsub.s32 %v919, %v1223
        %v1225 = vrot.slane %v1169, %v1224
        %v1226 = vsel %vm924, %v1225, %v1221
        %v1227 = vlaneseq
        %v1228 = vshrl.u32 %v1227, 7
        %v1229 = vsub.s32 %v914, %v1228
        %v1230 = vrot.slane %v1172, %v1229
        %v1231 = vlaneseq
        %v1232 = vshrl.u32 %v1231, 7
        %v1233 = vsub.s32 %v919, %v1232
        %v1234 = vrot.slane %v1175, %v1233
        %v1235 = vsel %vm924, %v1234, %v1230
        %v1236 = vlaneseq
        %v1237 = vshrl.u32 %v1236, 7
        %v1238 = vsub.s32 %v914, %v1237
        %v1239 = vrot.slane %v1178, %v1238
        %v1240 = vlaneseq
        %v1241 = vshrl.u32 %v1240, 7
        %v1242 = vsub.s32 %v919, %v1241
        %v1243 = vrot.slane %v1181, %v1242
        %v1244 = vsel %vm924, %v1243, %v1239
        %v1245 = vlaneseq
        %v1246 = vshrl.u32 %v1245, 7
        %v1247 = vsub.s32 %v914, %v1246
        %v1248 = vrot.slane %v1184, %v1247
        %v1249 = vlaneseq
        %v1250 = vshrl.u32 %v1249, 7
        %v1251 = vsub.s32 %v919, %v1250
        %v1252 = vrot.slane %v1187, %v1251
        %v1253 = vsel %vm924, %v1252, %v1248
        %v1254 = vlaneseq
        %v1255 = vshrl.u32 %v1254, 7
        %v1256 = vsub.s32 %v914, %v1255
        %v1257 = vrot.slane %v1190, %v1256
        %v1258 = vlaneseq
        %v1259 = vshrl.u32 %v1258, 7
        %v1260 = vsub.s32 %v919, %v1259
        %v1261 = vrot.slane %v1193, %v1260
        %v1262 = vsel %vm924, %v1261, %v1257
        %v1263 = vlaneseq
        %v1264 = vshrl.u32 %v1263, 7
        %v1265 = vsub.s32 %v914, %v1264
        %v1266 = vrot.slane %v1196, %v1265
        %v1267 = vlaneseq
        %v1268 = vshrl.u32 %v1267, 7
        %v1269 = vsub.s32 %v919, %v1268
        %v1270 = vrot.slane %v1199, %v1269
        %v1271 = vsel %vm924, %v1270, %v1266
        %v1272 = vsel %vm989, %v1217, %v1208
        %v1273 = vsel %vm991, %v1226, %v1272
        %v1274 = vsel %vm993, %v1235, %v1273
        %v1275 = vsel %vm995, %v1244, %v1274
        %v1276 = vsel %vm997, %v1253, %v1275
        %v1277 = vsel %vm999, %v1262, %v1276
        %v1278 = vsel %vm1001, %v1271, %v1277
        %v1280 = vsel %vm1004, %v1278, 0.0
        %1281 = vadd.xlane.f32.xlu0 %v1280
        %v1282 = vpop.xlane.xlu0 %1281
        %v1283 = vrot.slane %v1282, 4
        %v1284 = vadd.f32 %v1282, %v1283
        %v1285 = vrot.slane %v1284, 2
        %v1286 = vadd.f32 %v1284, %v1285
        %v1287 = vrot.slane %v1286, 1
        %v1288 = vadd.f32 %v1286, %v1287
        %s1289 = vtos %v1288
        %v1290 = vsel %vm1004, %v726, 0.0
        %1291 = vadd.xlane.f32.xlu0 %v1290
        %v1292 = vpop.xlane.xlu0 %1291
        %v1293 = vrot.slane %v1292, 4
        %v1294 = vadd.f32 %v1292, %v1293
        %v1295 = vrot.slane %v1294, 2
        %v1296 = vadd.f32 %v1294, %v1295
        %v1297 = vrot.slane %v1296, 1
        %v1298 = vadd.f32 %v1296, %v1297
        %s1299 = vtos %v1298
        %v1300 = vsel %vm1004, %v727, 0.0
        %1301 = vadd.xlane.f32.xlu0 %v1300
        %v1302 = vpop.xlane.xlu0 %1301
        %v1303 = vrot.slane %v1302, 4
        %v1304 = vadd.f32 %v1302, %v1303
        %v1305 = vrot.slane %v1304, 2
        %v1306 = vadd.f32 %v1304, %v1305
        %v1307 = vrot.slane %v1306, 1
        %v1308 = vadd.f32 %v1306, %v1307
        %s1309 = vtos %v1308
        %vm1310 = vcmp.eq.s32.totalorder %v914, 0
        %v1311 = vstv %s1014
        %v1312 = vsel %vm1310, %v1311, 0.0
        %vm1313 = vcmp.eq.s32.totalorder %v914, 1
        %v1314 = vstv %s1289
        %v1315 = vsel %vm1313, %v1314, %v1312
        %vm1316 = vcmp.eq.s32.totalorder %v914, 2
        %v1317 = vstv %s1299
        %v1318 = vsel %vm1316, %v1317, %v1315
        %vm1319 = vcmp.eq.s32.totalorder %v914, 3
        %v1320 = vstv %s1309
        %v1321 = vsel %vm1319, %v1320, %v1318
        %v1322 = vld [vmem:[%s344] sm:$0x1]
        %v1323 = vadd.f32 %v1322, %v1321
        %1324 = vst [vmem:[%s344] sm:$0x1] %v1323
        %s1325 = sand.u32 %s157, 1
        %s1326 = scalar_lea.sflag [#allocation4], %s1325
        %s1327 = sand.u32 %s157, 1
        %s1328 = scalar_lea.vmem [#allocation10], %s1327
        // Predicated region
        $region57: #{tpu_custom_call.1} parent=35 // pred_check
          %p1329 = pneg %p167
        $region58: #{tpu_custom_call.1} parent=35 // pred_check_branch
          %1331 = sbr.rel (%p1329) target = $region60
        $region59: #{tpu_custom_call.1} parent=35 // pred_region
          %s1333 = ssub.s32 16, 16
          %1334 = vsyncadd %s1326, %s1333
          %s1335 = smul.addr %s31, 16
          %s1336 = scalar_lea.hbm %s4, %s1335
          %s1338 = sshll.u32 %s1328, 4
          %s1339 = int_to_ptr.vmem [resolvable:$true] %s1338
          %1341 = dma.vmem_to_hbm [thread:$0]  %s1339, 16, %s1336, %s1326
        $region60: #{tpu_custom_call.1} parent=35 // pred_fallthru
          _
      $region36: #{tpu_custom_call.1} parent=5 // pred_fallthru
        _
      %p1342 = scmp.le.s32.totalorder 2, %s22
      // Predicated region
      $region61: #{tpu_custom_call.1} parent=5 // pred_check
        %p1343 = pneg %p1342
      $region62: #{tpu_custom_call.1} parent=5 // pred_check_branch
        %1345 = sbr.rel (%p1343) target = $region64
      $region63: #{tpu_custom_call.1} parent=5 // pred_region
        %s1346 = ssub.s32 %s22, 2
        // Predicated region
        $region65: #{tpu_custom_call.1} parent=63 // pred_check
          %p1347 = pneg %p173
        $region66: #{tpu_custom_call.1} parent=63 // pred_check_branch
          %1349 = sbr.rel (%p1347) target = $region68
        $region67: #{tpu_custom_call.1} parent=63 // pred_region
          %s1350 = sand.u32 %s158, 1
          %s1351 = scalar_lea.sflag [#allocation4], %s1350
          %s1352 = sand.u32 %s158, 1
          %s1353 = scalar_lea.vmem [#allocation10], %s1352
          %1354 = dma.done %s1351, 16
        $region68: #{tpu_custom_call.1} parent=63 // pred_fallthru
          _
      $region64: #{tpu_custom_call.1} parent=5 // pred_fallthru
        _
    $region6: #{tpu_custom_call.1} parent=1 // loop_footer
      %s26 = sadd.s32 1, %s22
    $region7: #{tpu_custom_call.1} parent=1 // loop_footer_branch
      %21 = sbr.rel target = $region3
    $region8: #{tpu_custom_call.1} parent=1 // loop_exit
      _
    %1355 = vsyncpa [#allocation3], 1
    %s1356 = scalar_lea.sflag [#allocation3], 1
    %1357 = vsyncpa %s1356, 1
    %1358 = vsyncpa [#allocation6], 1
    %s1359 = scalar_lea.sflag [#allocation6], 1
    %1360 = vsyncpa %s1359, 1
    %1361 = vsyncpa [#allocation9], 1
    %s1362 = scalar_lea.sflag [#allocation9], 1
    %1363 = vsyncpa %s1362, 1
    %1364 = vsyncpa [#allocation4], 1
    %s1365 = scalar_lea.sflag [#allocation4], 1
    %1366 = vsyncpa %s1365, 1

</llo_original>
